<compile_context>
chip_gen: v5e
topology: v5e:2x2
jax: 0.10.0
libtpu: 0.0.40
codegen_flags: <defaults>
</compile_context>

<pallas_src>
import functools

import jax
import jax.numpy as jnp
from jax.experimental import pallas as pl
from jax.experimental.pallas import tpu as pltpu


# ----------------------------- small helpers ---------------------------------

def _round_up(x, m):
    return ((x + m - 1) // m) * m


def _round_down(x, m):
    return (x // m) * m


def _largest_divisor_leq(n, cap):
    cap = max(1, min(cap, n))
    for d in range(cap, 0, -1):
        if n % d == 0:
            return d
    return 1


def _largest_128_divisor_leq(p, cap):
    """Largest multiple of 128 that divides p and is <= cap (0 if none)."""
    kmax = min(cap, p) // 128
    for k in range(kmax, 0, -1):
        if p % (k * 128) == 0:
            return k * 128
    return 0


def _chip_params():
    """(vmem_capacity_bytes, vpu_max_ch, want_multiple_parallel_blocks)."""
    kind = ""
    try:
        kind = jax.devices()[0].device_kind.lower()
    except Exception:
        pass

    if "v5" in kind:
        vmem_cap, vpu_max_ch, want_split = 128 << 20, 16, False
    elif "v6" in kind or "trillium" in kind:
        vmem_cap, vpu_max_ch, want_split = 128 << 20, 12, False
    else:
        # v7x (2 TCs, 64 MiB VMEM/TC) and unknown chips: conservative defaults.
        vmem_cap, vpu_max_ch, want_split = 64 << 20, 8, True

    try:  # refine VMEM capacity from the runtime when available
        vmem_cap = max(int(pltpu.get_tpu_info().vmem_capacity_bytes), 32 << 20)
    except Exception:
        pass
    return vmem_cap, vpu_max_ch, want_split


# ------------------------------- kernel --------------------------------------

def _conv1x1_kernel(x_ref, w_ref, b_ref, o_ref, *, use_vpu):
    # x_ref: (nb, Cin, tP)  w_ref: (Cout, Cin)  b_ref: (Cout, 1)  o_ref: (nb, Cout, tP)
    nb, cin, tp = x_ref.shape
    cout = w_ref.shape[0]
    x = x_ref[...]
    w = w_ref[...]
    b = b_ref[...]

    if use_vpu:
        # Tiny contraction: unrolled VPU broadcast-FMA over Cin (MXU would be a few %
        # utilized and VALU slots are idle in this memory-bound kernel).
        acc = jnp.broadcast_to(b[None, :, :].astype(jnp.float32), (nb, cout, tp))
        for c in range(cin):
            acc = acc + (w[None, :, c:c + 1].astype(jnp.float32)
                         * x[:, c:c + 1, :].astype(jnp.float32))
        o_ref[...] = acc.astype(o_ref.dtype)
    else:
        # Larger channel counts: MXU with f32 accumulation, one matmul per batch
        # element in the block (nb is capped when this branch is selected).
        for i in range(nb):
            acc = jnp.dot(w, x[i], preferred_element_type=jnp.float32) + b
            o_ref[i] = acc.astype(o_ref.dtype)


# ------------------------------- wrapper --------------------------------------

@jax.jit
def outconv_forward(x_nchw, weight, bias):
    """1x1 conv forward, same semantics as nn.Conv2d(in_ch, out_ch, 1).

    x_nchw : (N, Cin, H, W)    float32
    weight : (Cout, Cin, 1, 1) float32  (PyTorch Conv2d weight layout)
    bias   : (Cout,)           float32
    returns (N, Cout, H, W)    float32
    """
    N, Cin, H, W = x_nchw.shape
    Cout = weight.shape[0]
    P = H * W
    itemsize = jnp.dtype(x_nchw.dtype).itemsize

    vmem_cap, vpu_max_ch, want_split = _chip_params()
    use_vpu = (Cin <= vpu_max_ch) and (Cout <= vpu_max_ch)

    # ---- VMEM-budget-driven tiling (account for 8-sublane padding of Cin/Cout) ----
    cin_pad = _round_up(Cin, 8)
    cout_pad = _round_up(Cout, 8)
    bytes_per_px = 2 * (cin_pad + cout_pad) * itemsize        # double-buffered in+out
    pipeline_budget = max(min((vmem_cap >> 1) - (8 << 20), 32 << 20), 8 << 20)
    max_px = max(pipeline_budget // bytes_per_px, 128)        # pixels per grid step

    if P <= max_px:
        # Small image: take the full pixel extent and amortize the per-step pipeline
        # overhead by blocking several batch elements per grid step.
        tp_eff = P
        nb_cap = max(max_px // max(P, 1), 1)
        if not use_vpu:
            nb_cap = min(nb_cap, 8)   # MXU branch unrolls over the batch block
        nb = _largest_divisor_leq(N, nb_cap)
    else:
        # Large image: one batch element per step, big lane-dense pixel tile.
        nb = 1
        tp_eff = _largest_128_divisor_leq(P, max_px)          # no masked tail if possible
        if tp_eff == 0:
            tp_eff = max(_round_down(max_px, 128), 128)

    # v7x has 2 TensorCores: keep >= 2 parallel grid blocks so both cores get work.
    if want_split and (N // nb) * pl.cdiv(P, tp_eff) < 2:
        if N >= 2:
            nb = _largest_divisor_leq(N, max(N // 2, 1))
        elif tp_eff >= 256:
            tp_eff = max(_round_down(tp_eff // 2, 128), 128)

    grid = (N // nb, pl.cdiv(P, tp_eff))

    # Explicit scoped-VMEM limit: defaults (16/32 MiB) are below the tile footprint.
    tile_bytes = nb * (cin_pad + cout_pad) * tp_eff * itemsize
    const_bytes = 2 * cout_pad * (_round_up(Cin, 128) + 128) * itemsize  # weight + bias
    vmem_limit = int(min(vmem_cap - (8 << 20),
                         max(2 * tile_bytes + const_bytes + (4 << 20), 32 << 20)))

    x3d = x_nchw.reshape(N, Cin, P)        # free reshape, stays in NCHW order
    w2d = weight.reshape(Cout, Cin)        # (Cout, Cin)
    b2d = bias.reshape(Cout, 1)            # (Cout, 1) -> broadcasts over lanes

    kernel = functools.partial(_conv1x1_kernel, use_vpu=use_vpu)

    out3d = pl.pallas_call(
        kernel,
        out_shape=jax.ShapeDtypeStruct((N, Cout, P), x_nchw.dtype),
        grid_spec=pltpu.PrefetchScalarGridSpec(
            num_scalar_prefetch=0,
            grid=grid,
            in_specs=[
                # Lane-dense (batch-block, all-channel, pixel-tile) chunk of the input.
                pl.BlockSpec((nb, Cin, tp_eff), lambda n, j: (n, 0, j)),
                # Weight / bias: constant index maps -> stay resident in VMEM.
                pl.BlockSpec((Cout, Cin), lambda n, j: (0, 0)),
                pl.BlockSpec((Cout, 1), lambda n, j: (0, 0)),
            ],
            out_specs=pl.BlockSpec((nb, Cout, tp_eff), lambda n, j: (n, 0, j)),
        ),
        compiler_params=pltpu.CompilerParams(
            # Both grid axes are independent -> megacore sharding where available.
            dimension_semantics=("parallel", "parallel"),
            vmem_limit_bytes=vmem_limit,
        ),
    )(x3d, w2d, b2d)

    # (N, Cout, P) -> (N, Cout, H, W): free reshape, already NCHW.
    return out3d.reshape(N, Cout, H, W)


# ------------------------------ params / test ---------------------------------

def init_params(key, in_ch, out_ch):
    # Deterministic init mimicking PyTorch Conv2d defaults:
    # weight ~ U(-k, k), bias ~ U(-k, k), k = 1/sqrt(fan_in), fan_in = in_ch*1*1
    k = 1.0 / jnp.sqrt(jnp.float32(in_ch))
    kw, kb = jax.random.split(key)
    weight = jax.random.uniform(kw, (out_ch, in_ch, 1, 1), jnp.float32, -k, k)
    bias = jax.random.uniform(kb, (out_ch,), jnp.float32, -k, k)
    return weight, bias


if __name__ == "__main__":
    key = jax.random.PRNGKey(0)
    kx, kp = jax.random.split(key)

    N, in_ch, out_ch, Hs, Ws = 2, 4, 3, 16, 16
    x = jax.random.normal(kx, (N, in_ch, Hs, Ws), jnp.float32)
    weight, bias = init_params(kp, in_ch, out_ch)

    y = jax.block_until_ready(outconv_forward(x, weight, bias))

    # Reference check against plain-JAX 1x1 conv (einsum) semantics.
    y_ref = (
        jnp.einsum("nchw,oc->nohw", x, weight.reshape(out_ch, in_ch))
        + bias[None, :, None, None]
    )
    assert y.shape == (N, out_ch, Hs, Ws)
    assert jnp.allclose(y, y_ref, atol=1e-5, rtol=1e-5)

    print("KERNEL_OK")
</pallas_src>

<mosaic_0001>
module attributes {stable_mosaic.version = 11 : i64} {
  func.func @_conv1x1_kernel(%arg0: i32, %arg1: i32, %arg2: memref<1x4x256xf32, #tpu.memory_space<vmem>>, %arg3: memref<3x4xf32, #tpu.memory_space<vmem>>, %arg4: memref<3x1xf32, #tpu.memory_space<vmem>>, %arg5: memref<1x3x256xf32, #tpu.memory_space<vmem>>) attributes {dimension_semantics = [#tpu.dimension_semantics<parallel>, #tpu.dimension_semantics<parallel>], iteration_bounds = array<i64: 2, 1>, scalar_prefetch = 0 : i64, scratch_operands = 0 : i64, tpu.core_type = #tpu.core_type<tc>, window_params = [{transform_indices = @transform_0, window_bounds = array<i64: 1, 4, 256>}, {pipeline_mode = #tpu.pipeline_mode<synchronous>, transform_indices = @transform_1, window_bounds = array<i64: 3, 4>}, {pipeline_mode = #tpu.pipeline_mode<synchronous>, transform_indices = @transform_2, window_bounds = array<i64: 3, 1>}, {transform_indices = @transform_3, window_bounds = array<i64: 1, 3, 256>}]} {
    %c0 = arith.constant 0 : index
    %c0_0 = arith.constant 0 : index
    %c0_1 = arith.constant 0 : index
    %0 = vector.load %arg2[%c0, %c0_0, %c0_1] : memref<1x4x256xf32, #tpu.memory_space<vmem>>, vector<1x4x256xf32>
    %c0_2 = arith.constant 0 : index
    %c0_3 = arith.constant 0 : index
    %1 = vector.load %arg3[%c0_2, %c0_3] : memref<3x4xf32, #tpu.memory_space<vmem>>, vector<3x4xf32>
    %c0_4 = arith.constant 0 : index
    %c0_5 = arith.constant 0 : index
    %2 = vector.load %arg4[%c0_4, %c0_5] : memref<3x1xf32, #tpu.memory_space<vmem>>, vector<3x1xf32>
    %3 = vector.shape_cast %2 : vector<3x1xf32> to vector<1x3x1xf32>
    %4 = vector.shape_cast %3 : vector<1x3x1xf32> to vector<1x3x1xf32>
    %5 = vector.broadcast %4 : vector<1x3x1xf32> to vector<1x3x256xf32>
    %6 = vector.extract_strided_slice %1 {offsets = [0, 0], sizes = [3, 1], strides = [1, 1]} : vector<3x4xf32> to vector<3x1xf32>
    %7 = vector.shape_cast %6 : vector<3x1xf32> to vector<1x3x1xf32>
    %8 = vector.extract_strided_slice %0 {offsets = [0, 0, 0], sizes = [1, 1, 256], strides = [1, 1, 1]} : vector<1x4x256xf32> to vector<1x1x256xf32>
    %9 = vector.broadcast %7 : vector<1x3x1xf32> to vector<1x3x256xf32>
    %10 = vector.broadcast %8 : vector<1x1x256xf32> to vector<1x3x256xf32>
    %11 = arith.mulf %9, %10 : vector<1x3x256xf32>
    %12 = arith.addf %5, %11 : vector<1x3x256xf32>
    %13 = vector.extract_strided_slice %1 {offsets = [0, 1], sizes = [3, 1], strides = [1, 1]} : vector<3x4xf32> to vector<3x1xf32>
    %14 = vector.shape_cast %13 : vector<3x1xf32> to vector<1x3x1xf32>
    %15 = vector.extract_strided_slice %0 {offsets = [0, 1, 0], sizes = [1, 1, 256], strides = [1, 1, 1]} : vector<1x4x256xf32> to vector<1x1x256xf32>
    %16 = vector.broadcast %14 : vector<1x3x1xf32> to vector<1x3x256xf32>
    %17 = vector.broadcast %15 : vector<1x1x256xf32> to vector<1x3x256xf32>
    %18 = arith.mulf %16, %17 : vector<1x3x256xf32>
    %19 = arith.addf %12, %18 : vector<1x3x256xf32>
    %20 = vector.extract_strided_slice %1 {offsets = [0, 2], sizes = [3, 1], strides = [1, 1]} : vector<3x4xf32> to vector<3x1xf32>
    %21 = vector.shape_cast %20 : vector<3x1xf32> to vector<1x3x1xf32>
    %22 = vector.extract_strided_slice %0 {offsets = [0, 2, 0], sizes = [1, 1, 256], strides = [1, 1, 1]} : vector<1x4x256xf32> to vector<1x1x256xf32>
    %23 = vector.broadcast %21 : vector<1x3x1xf32> to vector<1x3x256xf32>
    %24 = vector.broadcast %22 : vector<1x1x256xf32> to vector<1x3x256xf32>
    %25 = arith.mulf %23, %24 : vector<1x3x256xf32>
    %26 = arith.addf %19, %25 : vector<1x3x256xf32>
    %27 = vector.extract_strided_slice %1 {offsets = [0, 3], sizes = [3, 1], strides = [1, 1]} : vector<3x4xf32> to vector<3x1xf32>
    %28 = vector.shape_cast %27 : vector<3x1xf32> to vector<1x3x1xf32>
    %29 = vector.extract_strided_slice %0 {offsets = [0, 3, 0], sizes = [1, 1, 256], strides = [1, 1, 1]} : vector<1x4x256xf32> to vector<1x1x256xf32>
    %30 = vector.broadcast %28 : vector<1x3x1xf32> to vector<1x3x256xf32>
    %31 = vector.broadcast %29 : vector<1x1x256xf32> to vector<1x3x256xf32>
    %32 = arith.mulf %30, %31 : vector<1x3x256xf32>
    %33 = arith.addf %26, %32 : vector<1x3x256xf32>
    %c0_6 = arith.constant 0 : index
    %c0_7 = arith.constant 0 : index
    %c0_8 = arith.constant 0 : index
    %34 = vector.load %arg5[%c0_6, %c0_7, %c0_8] : memref<1x3x256xf32, #tpu.memory_space<vmem>>, vector<1x3x256xf32>
    tpu.vector_store %arg5[%c0_6, %c0_7, %c0_8], %33 {strides = array<i32>} : memref<1x3x256xf32, #tpu.memory_space<vmem>>, vector<1x3x256xf32>,
    return
  }
  func.func @transform_0(%arg0: i32, %arg1: i32) -> (i32, i32, i32) {
    %c0_i32 = arith.constant 0 : i32
    %c0_i32_0 = arith.constant 0 : i32
    return %arg0, %c0_i32, %arg1 : i32, i32, i32
  }
  func.func @transform_1(%arg0: i32, %arg1: i32) -> (i32, i32) {
    %c0_i32 = arith.constant 0 : i32
    %c0_i32_0 = arith.constant 0 : i32
    %c0_i32_1 = arith.constant 0 : i32
    return %c0_i32, %c0_i32_0 : i32, i32
  }
  func.func @transform_2(%arg0: i32, %arg1: i32) -> (i32, i32) {
    %c0_i32 = arith.constant 0 : i32
    %c0_i32_0 = arith.constant 0 : i32
    %c0_i32_1 = arith.constant 0 : i32
    return %c0_i32, %c0_i32_0 : i32, i32
  }
  func.func @transform_3(%arg0: i32, %arg1: i32) -> (i32, i32, i32) {
    %c0_i32 = arith.constant 0 : i32
    %c0_i32_0 = arith.constant 0 : i32
    return %arg0, %c0_i32, %arg1 : i32, i32, i32
  }
}

</mosaic_0001>

<llo_original>
// kernel: outconv_forward.1
$region0: #{outconv_forward.1}
  #allocation0 [shape = 'u32[]', space=smem, size = 0x4, offset = 0x4, fixed_abs, tag = 'smem constant byte address 0x4 - core index']
  #allocation1 [shape = 'u32[72,128]{1,0:T(1,128)}', space=vmem, size = 0x9000, scoped, tag = 'internal scratch']
  %s0 = inlined_call_operand.vmem [shape: f32[2,4,256], index: 0, kind: input, shape index: {}]
  %s1 = inlined_call_operand.vmem [shape: f32[3,4], index: 1, kind: input, shape index: {}]
  %s2 = inlined_call_operand.vmem [shape: f32[3,1], index: 2, kind: input, shape index: {}]
  %s3 = inlined_call_operand.vmem [shape: f32[2,3,256], index: 3, kind: output, shape index: {}]
  %s4 = sld [smem:[#allocation0]]
  $region45: #{outconv_forward.1} parent=0
    _
  %s6 = ssub.s32 1, %s4
  %s7 = scalar_select 0, %s6, %s4
  loop: start=0, step=1, limit=4
  $region2: #{outconv_forward.1} parent=0 // loop_pre_header
    _
  $region3: #{outconv_forward.1} parent=0 // loop_header
    %s9 = sphi 0, %s13
    %p10 = scmp.ge.s32.totalorder %s9, 4
    %s16 = sphi 0, %s28
    %s17 = sphi 0, %s24
    %s18 = sphi 0, %s16
    %s19 = sphi 0, %s17
    %s20 = sphi 0, %s18
    %s21 = sphi 0, %s19
    %s33 = sphi 0, %s35
    %s36 = sphi 0, %s33
    %s37 = sphi 0, %s36
    %s53 = sphi 0, %s37
    %s57 = sphi 0, %s57
    %s59 = sphi 0, %s57
    %s60 = sphi 0, %s59
    %s74 = sphi 0, %s60
    %s78 = sphi 0, %s78
    %s80 = sphi 0, %s78
    %s81 = sphi 0, %s80
    %s95 = sphi 0, %s81
    %s103 = sphi 0, %s105
    %s106 = sphi 0, %s103
    %s107 = sphi 0, %s106
    %s123 = sphi 0, %s107
  $region4: #{outconv_forward.1} parent=0 // loop_header_branch
    %12 = sbr.rel (%p10) target = $region8
  $region5: #{outconv_forward.1} parent=0 // loop_body
    %s14 = ssub.s32 %s9, 1
    %s15 = ssub.s32 %s9, 2
    %s22 = sadd.s32 1, %s17
    %p23 = scmp.ge.s32.totalorder %s22, 1
    %s24 = scalar_select %p23, 0, %s22
    %s25 = sadd.s32 1, %s16
    %s26 = scalar_select %p23, %s25, %s16
    %p27 = scmp.ge.s32.totalorder %s26, 2
    %s28 = scalar_select %p27, 0, %s26
    %s29 = ssub.s32 %s16, %s28
    %s30 = ssub.s32 %s17, %s24
    %s31 = sor.u32 %s29, %s30
    %p32 = scmp.eq.s32.totalorder %s31, 0
    %s34 = sadd.s32 %s33, 1
    %s35 = scalar_select %p32, %s33, %s34
    %p38 = pneg %p32
    %p39 = scmp.eq.s32.totalorder %s9, 1
    %p40 = por %p38, %p39
    %p41 = scmp.ne.s32.totalorder %s33, %s36
    %p42 = scmp.eq.s32.totalorder %s9, 0
    %p43 = por %p41, %p42
    %p44 = scmp.ne.s32.totalorder %s33, %s36
    %p45 = scmp.eq.s32.totalorder %s14, 1
    %p46 = por %p44, %p45
    %p47 = scmp.ne.s32.totalorder %s36, %s37
    %p48 = scmp.eq.s32.totalorder %s14, 0
    %p49 = por %p47, %p48
    %p50 = scmp.ne.s32.totalorder %s36, %s37
    %p51 = scmp.eq.s32.totalorder %s15, 1
    %p52 = por %p50, %p51
    %p54 = scmp.ne.s32.totalorder %s37, %s53
    %p55 = scmp.eq.s32.totalorder %s15, 0
    %p56 = por %p54, %p55
    %s58 = sadd.s32 %s57, 1
    %p61 = scmp.eq.s32.totalorder %s9, 1
    %p62 = scmp.ne.s32.totalorder %s57, %s59
    %p63 = scmp.eq.s32.totalorder %s9, 0
    %p64 = por %p62, %p63
    %p65 = scmp.ne.s32.totalorder %s57, %s59
    %p66 = scmp.eq.s32.totalorder %s14, 1
    %p67 = por %p65, %p66
    %p68 = scmp.ne.s32.totalorder %s59, %s60
    %p69 = scmp.eq.s32.totalorder %s14, 0
    %p70 = por %p68, %p69
    %p71 = scmp.ne.s32.totalorder %s59, %s60
    %p72 = scmp.eq.s32.totalorder %s15, 1
    %p73 = por %p71, %p72
    %p75 = scmp.ne.s32.totalorder %s60, %s74
    %p76 = scmp.eq.s32.totalorder %s15, 0
    %p77 = por %p75, %p76
    %s79 = sadd.s32 %s78, 1
    %p82 = scmp.eq.s32.totalorder %s9, 1
    %p83 = scmp.ne.s32.totalorder %s78, %s80
    %p84 = scmp.eq.s32.totalorder %s9, 0
    %p85 = por %p83, %p84
    %p86 = scmp.ne.s32.totalorder %s78, %s80
    %p87 = scmp.eq.s32.totalorder %s14, 1
    %p88 = por %p86, %p87
    %p89 = scmp.ne.s32.totalorder %s80, %s81
    %p90 = scmp.eq.s32.totalorder %s14, 0
    %p91 = por %p89, %p90
    %p92 = scmp.ne.s32.totalorder %s80, %s81
    %p93 = scmp.eq.s32.totalorder %s15, 1
    %p94 = por %p92, %p93
    %p96 = scmp.ne.s32.totalorder %s81, %s95
    %p97 = scmp.eq.s32.totalorder %s15, 0
    %p98 = por %p96, %p97
    %s99 = ssub.s32 %s16, %s28
    %s100 = ssub.s32 %s17, %s24
    %s101 = sor.u32 %s99, %s100
    %p102 = scmp.eq.s32.totalorder %s101, 0
    %s104 = sadd.s32 %s103, 1
    %s105 = scalar_select %p102, %s103, %s104
    %p108 = pneg %p102
    %p109 = scmp.eq.s32.totalorder %s9, 1
    %p110 = por %p108, %p109
    %p111 = scmp.ne.s32.totalorder %s103, %s106
    %p112 = scmp.eq.s32.totalorder %s9, 0
    %p113 = por %p111, %p112
    %p114 = scmp.ne.s32.totalorder %s103, %s106
    %p115 = scmp.eq.s32.totalorder %s14, 1
    %p116 = por %p114, %p115
    %p117 = scmp.ne.s32.totalorder %s106, %s107
    %p118 = scmp.eq.s32.totalorder %s14, 0
    %p119 = por %p117, %p118
    %p120 = scmp.ne.s32.totalorder %s106, %s107
    %p121 = scmp.eq.s32.totalorder %s15, 1
    %p122 = por %p120, %p121
    %p124 = scmp.ne.s32.totalorder %s107, %s123
    %p125 = scmp.eq.s32.totalorder %s15, 0
    %p126 = por %p124, %p125
    %p127 = scmp.le.s32.totalorder 1, %s9
    %p128 = scmp.lt.s32.totalorder %s9, 3
    %p129 = pnand %p127, %p128
    %p130 = pneg %p129
    // Predicated region
    $region9: #{outconv_forward.1} parent=5 // pred_check
      _
    $region10: #{outconv_forward.1} parent=5 // pred_check_branch
      %132 = sbr.rel (%p129) target = $region12
    $region11: #{outconv_forward.1} parent=5 // pred_region
      %s133 = ssub.s32 %s9, 1
      // Predicated region
      $region13: #{outconv_forward.1} parent=11 // pred_check
        %p134 = pneg %p70
      $region14: #{outconv_forward.1} parent=11 // pred_check_branch
        %136 = sbr.rel (%p134) target = $region16
      $region15: #{outconv_forward.1} parent=11 // pred_region
        _
      $region16: #{outconv_forward.1} parent=11 // pred_fallthru
        _
      // Predicated region
      $region17: #{outconv_forward.1} parent=11 // pred_check
        %p137 = pneg %p91
      $region18: #{outconv_forward.1} parent=11 // pred_check_branch
        %139 = sbr.rel (%p137) target = $region20
      $region19: #{outconv_forward.1} parent=11 // pred_region
        _
      $region20: #{outconv_forward.1} parent=11 // pred_fallthru
        _
    $region12: #{outconv_forward.1} parent=5 // pred_fallthru
      _
    %p140 = scmp.lt.s32.totalorder %s9, 2
    // Predicated region
    $region21: #{outconv_forward.1} parent=5 // pred_check
      %p141 = pneg %p140
    $region22: #{outconv_forward.1} parent=5 // pred_check_branch
      %143 = sbr.rel (%p141) target = $region24
    $region23: #{outconv_forward.1} parent=5 // pred_region
      // Predicated region
      $region25: #{outconv_forward.1} parent=23 // pred_check
        %p144 = pneg %p43
      $region26: #{outconv_forward.1} parent=23 // pred_check_branch
        %146 = sbr.rel (%p144) target = $region28
      $region27: #{outconv_forward.1} parent=23 // pred_region
        %s147 = smul.u32 2, %s17
        %p148 = scmp.lt.s32.totalorder %s16, 1
        %s149 = scalar_select %p148, %s16, 1
        %p150 = scmp.lt.s32.totalorder %s147, 1
        %s151 = scalar_select %p150, %s147, 1
        %s152 = smul.addr %s149, 2
        %s153 = sadd.s32 %s151, %s152
        %s154 = smul.addr %s153, 4
        %s155 = scalar_lea.vmem %s0, %s154
        %s156 = smul.u32 2, %s17
      $region28: #{outconv_forward.1} parent=23 // pred_fallthru
        _
    $region24: #{outconv_forward.1} parent=5 // pred_fallthru
      _
    %p157 = scmp.le.s32.totalorder 1, %s9
    %p158 = scmp.lt.s32.totalorder %s9, 3
    %p159 = pnand %p157, %p158
    %p160 = pneg %p159
    // Predicated region
    $region29: #{outconv_forward.1} parent=5 // pred_check
      _
    $region30: #{outconv_forward.1} parent=5 // pred_check_branch
      %162 = sbr.rel (%p159) target = $region32
    $region31: #{outconv_forward.1} parent=5 // pred_region
      %s163 = ssub.s32 %s9, 1
      %s164 = smul.u32 2, %s19
      %p165 = scmp.lt.s32.totalorder %s18, 1
      %s166 = scalar_select %p165, %s18, 1
      %p167 = scmp.lt.s32.totalorder %s164, 1
      %s168 = scalar_select %p167, %s164, 1
      %s169 = smul.addr %s166, 2
      %s170 = sadd.s32 %s168, %s169
      %s171 = smul.addr %s170, 4
      %s172 = scalar_lea.vmem %s0, %s171
      %p173 = pneg %p49
      %p174 = pneg %p46
      %p175 = pneg %p70
      %p176 = pneg %p67
      %p177 = pneg %p91
      %p178 = pneg %p88
      %p179 = pneg %p119
      %p180 = pneg %p116
      %s181 = smul.u32 2, %s19
      %p182 = scmp.lt.s32.totalorder %s18, 1
      %s183 = scalar_select %p182, %s18, 1
      %p184 = scmp.lt.s32.totalorder %s181, 1
      %s185 = scalar_select %p184, %s181, 1
      %s186 = smul.addr %s183, 2
      %s187 = sadd.s32 %s185, %s186
      %s188 = smul.addr %s187, 4
      %s189 = scalar_lea.vmem %s3, %s188
      %s190 = smul.u32 2, %s19
      %p191 = scmp.lt.s32.totalorder %s18, 1
      %s192 = scalar_select %p191, %s18, 1
      %p193 = scmp.lt.s32.totalorder %s190, 1
      %s194 = scalar_select %p193, %s190, 1
      %s195 = smul.addr %s192, 2
      %s196 = sadd.s32 %s194, %s195
      %s197 = smul.addr %s196, 4
      %s198 = scalar_lea.vmem %s0, %s197
      %s199 = smul.u32 2, %s19
      %s200 = smul.u32 2, %s19
      %p201 = scmp.lt.s32.totalorder %s18, 1
      %s202 = scalar_select %p201, %s18, 1
      %p203 = scmp.lt.s32.totalorder %s200, 1
      %s204 = scalar_select %p203, %s200, 1
      %s205 = smul.addr %s202, 2
      %s206 = sadd.s32 %s204, %s205
      %s207 = smul.addr %s206, 4
      %s208 = scalar_lea.vmem %s3, %s207
      %s209 = smul.u32 2, %s19
      %v210 = vld [vmem:[%s198] sm:$0xff]
      %v211 = vld [vmem:[%s1] sm:$0x7]
      %v212 = vld [vmem:[%s2] sm:$0x7]
      %214 = vset.pattern.permute.xlu0 0
      %215 = vperm.xlu0 %214, %v212
      %v216 = vpop.permute.xlu0 %215
      %219 = vset.pattern.permute.xlu0 0
      %220 = vperm.xlu0 %219, %v211
      %v221 = vpop.permute.xlu0 %220
      %v224 = vperm.slane %v210, 0
      %v225 = vperm.slane %v210, 4
      %v228 = vperm.slane %v224, 0
      %v229 = vperm.slane %v225, 0
      %v230 = vmul.f32 %v221, %v228
      %v231 = vmul.f32 %v221, %v229
      %v232 = vadd.f32 %v216, %v230
      %v233 = vadd.f32 %v216, %v231
      %234 = vset.pattern.permute.xlu0 1
      %235 = vperm.xlu0 %234, %v211
      %v236 = vpop.permute.xlu0 %235
      %v238 = vperm.slane %v210, 1
      %v239 = vperm.slane %v210, 5
      %v242 = vperm.slane %v238, 1
      %v243 = vperm.slane %v239, 1
      %v244 = vmul.f32 %v236, %v242
      %v245 = vmul.f32 %v236, %v243
      %v246 = vadd.f32 %v232, %v244
      %v247 = vadd.f32 %v233, %v245
      %248 = vset.pattern.permute.xlu0 2
      %249 = vperm.xlu0 %248, %v211
      %v250 = vpop.permute.xlu0 %249
      %v252 = vperm.slane %v210, 2
      %v253 = vperm.slane %v210, 6
      %v256 = vperm.slane %v252, 2
      %v257 = vperm.slane %v253, 2
      %v258 = vmul.f32 %v250, %v256
      %v259 = vmul.f32 %v250, %v257
      %v260 = vadd.f32 %v246, %v258
      %v261 = vadd.f32 %v247, %v259
      %262 = vset.pattern.permute.xlu0 3
      %263 = vperm.xlu0 %262, %v211
      %v264 = vpop.permute.xlu0 %263
      %v266 = vperm.slane %v210, 3
      %v267 = vperm.slane %v210, 7
      %v270 = vperm.slane %v266, 3
      %v271 = vperm.slane %v267, 3
      %v272 = vmul.f32 %v264, %v270
      %v273 = vmul.f32 %v264, %v271
      %v274 = vadd.f32 %v260, %v272
      %v275 = vadd.f32 %v261, %v273
      %v278 = vrot.slane %v275, 4
      %vm279 = vcmask 1043456
      %v280 = vsel %vm279, %v274, %v278
      %282 = vst [vmem:[%s208] sm:$0x77] %v280
      %s283 = smul.u32 2, %s19
      %p284 = scmp.lt.s32.totalorder %s18, 1
      %s285 = scalar_select %p284, %s18, 1
      %p286 = scmp.lt.s32.totalorder %s283, 1
      %s287 = scalar_select %p286, %s283, 1
      %s288 = smul.addr %s285, 2
      %s289 = sadd.s32 %s287, %s288
      %s290 = smul.addr %s289, 4
      %s291 = scalar_lea.vmem %s3, %s290
      // Predicated region
      $region33: #{outconv_forward.1} parent=31 // pred_check
        %p292 = pneg %p116
      $region34: #{outconv_forward.1} parent=31 // pred_check_branch
        %294 = sbr.rel (%p292) target = $region36
      $region35: #{outconv_forward.1} parent=31 // pred_region
        %s295 = smul.u32 2, %s19
      $region36: #{outconv_forward.1} parent=31 // pred_fallthru
        _
    $region32: #{outconv_forward.1} parent=5 // pred_fallthru
      _
    %p296 = scmp.le.s32.totalorder 2, %s9
    // Predicated region
    $region37: #{outconv_forward.1} parent=5 // pred_check
      %p297 = pneg %p296
    $region38: #{outconv_forward.1} parent=5 // pred_check_branch
      %299 = sbr.rel (%p297) target = $region40
    $region39: #{outconv_forward.1} parent=5 // pred_region
      %s300 = ssub.s32 %s9, 2
      // Predicated region
      $region41: #{outconv_forward.1} parent=39 // pred_check
        %p301 = pneg %p122
      $region42: #{outconv_forward.1} parent=39 // pred_check_branch
        %303 = sbr.rel (%p301) target = $region44
      $region43: #{outconv_forward.1} parent=39 // pred_region
        %s304 = smul.u32 2, %s21
        %p305 = scmp.lt.s32.totalorder %s20, 1
        %s306 = scalar_select %p305, %s20, 1
        %p307 = scmp.lt.s32.totalorder %s304, 1
        %s308 = scalar_select %p307, %s304, 1
        %s309 = smul.addr %s306, 2
        %s310 = sadd.s32 %s308, %s309
        %s311 = smul.addr %s310, 4
        %s312 = scalar_lea.vmem %s3, %s311
      $region44: #{outconv_forward.1} parent=39 // pred_fallthru
        _
    $region40: #{outconv_forward.1} parent=5 // pred_fallthru
      _
  $region6: #{outconv_forward.1} parent=0 // loop_footer
    %s13 = sadd.s32 1, %s9
  $region7: #{outconv_forward.1} parent=0 // loop_footer_branch
    %8 = sbr.rel target = $region3
  $region8: #{outconv_forward.1} parent=0 // loop_exit
    _

</llo_original>
